<compile_context>
chip_gen: v5e
topology: v5e:2x2
jax: 0.10.0
libtpu: 0.0.40
codegen_flags: <defaults>
</compile_context>

<pallas_src>
import functools

import jax
import jax.numpy as jnp
from jax.experimental import pallas as pl
from jax.experimental.pallas import tpu as pltpu

_LANE = 128
_SUBLANE = 8


def _round_up(n: int, m: int) -> int:
    return ((n + m - 1) // m) * m


# ----------------------------------------------------------------------------
# Fused MLP kernel: out = Linear_out(ReLU(Linear_n(... ReLU(Linear_1(x)) ...)))
# ----------------------------------------------------------------------------
def _mlp_kernel(*refs, nlayers, act_dtype):
    """refs = (x_ref, w_0, b_0, ..., w_nlayers, b_nlayers, o_ref).

    w_l: (in_pad, out_pad), b_l: (1, out_pad).  Hidden layers use ReLU; the
    final layer is identity (DiscQMLP's out_activation=nn.Identity()).  All
    intermediate activations live in vregs/VMEM only - no HBM round trips.
    """
    x_ref = refs[0]
    o_ref = refs[-1]
    wb = refs[1:-1]

    h = x_ref[...].astype(act_dtype)
    for l in range(nlayers + 1):
        w = wb[2 * l][...]
        b = wb[2 * l + 1][...].astype(jnp.float32)
        # MXU matmul with f32 accumulation; bias-add / ReLU on the VPU in f32.
        acc = jnp.dot(h.astype(w.dtype), w, preferred_element_type=jnp.float32) + b
        if l < nlayers:
            # ReLU in f32, then a single cast back to the activation dtype
            # (bf16 when weights are bf16) -> halves live activation bytes.
            h = jnp.maximum(acc, 0.0).astype(act_dtype)
        else:
            h = acc
    o_ref[...] = h.astype(o_ref.dtype)


# ----------------------------------------------------------------------------
# Capability / hardware probes
# ----------------------------------------------------------------------------
def _probe_copy_kernel(x_ref, o_ref):
    o_ref[...] = x_ref[...]


@functools.lru_cache(maxsize=None)
def _weight_pipeline_mode():
    """pl.Buffered(1): single VMEM copy for constant weight blocks (their block
    index never changes, so they are DMA'd once).  Probed once on a tiny kernel
    so we fall back to default double-buffering if this Pallas build does not
    support pipeline_mode on the top-level grid."""
    try:
        mode = pl.Buffered(buffer_count=1)
        x = jnp.zeros((_SUBLANE, _LANE), jnp.float32)
        out = pl.pallas_call(
            _probe_copy_kernel,
            out_shape=jax.ShapeDtypeStruct((_SUBLANE, _LANE), jnp.float32),
            grid=(1,),
            in_specs=[pl.BlockSpec((_SUBLANE, _LANE), lambda i: (0, 0),
                                   pipeline_mode=mode)],
            out_specs=pl.BlockSpec((_SUBLANE, _LANE), lambda i: (0, 0)),
        )(x)
        jax.block_until_ready(out)
        return mode
    except Exception:
        return None


def _vmem_capacity_bytes() -> int:
    try:
        return int(pltpu.get_tpu_info().vmem_capacity_bytes)
    except Exception:
        return 64 << 20  # conservative default (v7x per-TensorCore)


def _num_tensorcores() -> int:
    try:
        kind = jax.devices()[0].device_kind.lower()
    except Exception:
        return 1
    # v4 / v5p (megacore) and v7x expose 2 TensorCores per chip.
    if "v4" in kind or "v5p" in kind or "v7" in kind or "7x" in kind:
        return 2
    return 1


# ----------------------------------------------------------------------------
# Wrapper: single pallas_call, batch-tiled "parallel" grid
# ----------------------------------------------------------------------------
def disc_q_mlp(params, x, *, block_b=None):
    """Fused DiscQMLP forward.

    params: list of (w, b) per layer with w: (in_features, out_features)
    (already transposed vs. torch.nn.Linear.weight) and b: (out_features,).
    Weights may be float32 or bfloat16 (bf16 halves HBM weight traffic).
    """
    squeeze = x.ndim == 1
    if squeeze:
        x = x[None]
    x = x.astype(jnp.float32)
    B, obs_dim = x.shape
    nlayers = len(params) - 1
    acs_dim = params[-1][0].shape[1]
    w_dtype = params[0][0].dtype
    act_dtype = jnp.bfloat16 if w_dtype == jnp.bfloat16 else jnp.float32

    # --- Zero-pad every feature dim up to a multiple of 128 lanes. -----------
    # Lane-dense weight tiles restore MXU column utilization and the padded
    # acs_dim makes the output store unmasked/lane-dense.  Zero rows/cols/bias
    # are exact (contribute 0, ReLU(0)=0); real columns are sliced out below.
    # (For repeated inference, pad params once outside jit to avoid re-padding
    # the weights in HBM on every call.)
    padded = []
    for w, b in params:
        fin, fout = w.shape
        fin_p, fout_p = _round_up(fin, _LANE), _round_up(fout, _LANE)
        if (fin_p, fout_p) != (fin, fout):
            w = jnp.pad(w, ((0, fin_p - fin), (0, fout_p - fout)))
        if fout_p != fout:
            b = jnp.pad(b, (0, fout_p - fout))
        padded.append((w, b.reshape(1, fout_p)))
    d_in_p = padded[0][0].shape[0]
    d_out_p = padded[-1][0].shape[1]
    d_wide = max(w.shape[1] for w, _ in padded)

    # --- VMEM budget -> batch tile size ---------------------------------------
    weight_mode = _weight_pipeline_mode()
    weight_buf = 1 if weight_mode is not None else 2  # single vs double buffer
    weight_bytes = sum(w.size * w.dtype.itemsize + b.size * b.dtype.itemsize
                       for w, b in padded)
    vmem_limit = int(_vmem_capacity_bytes() * 0.75)   # headroom for compiler scratch
    act_itemsize = jnp.dtype(act_dtype).itemsize
    per_row = (2 * 4 * d_in_p             # double-buffered x tile (f32)
               + 2 * 4 * d_out_p          # double-buffered out tile (f32)
               + 4 * d_wide               # f32 accumulator rows
               + act_itemsize * d_wide)   # live activation rows
    if block_b is None:
        avail = vmem_limit - weight_buf * weight_bytes - (2 << 20)
        block_b = max(_SUBLANE,
                      min(1024, (avail // max(per_row, 1)) // _SUBLANE * _SUBLANE))
        # TODO(synk): if resident weights themselves exceed the VMEM budget
        # (very large nunits/nlayers), stream them per layer with
        # pltpu.emit_pipeline instead of keeping them all VMEM-resident.

    tb = min(int(block_b), _round_up(B, _SUBLANE))
    num_tc = _num_tensorcores()
    if num_tc > 1 and B > _SUBLANE:
        # Make sure the "parallel" batch axis has >= num_tc steps so both
        # TensorCores (v7x / megacore) get work even for mid-size batches.
        tb = min(tb, _round_up(pl.cdiv(B, num_tc), _SUBLANE))
    tb = max(tb, _SUBLANE)
    n_tiles = pl.cdiv(B, tb)
    Bp = n_tiles * tb

    # One fused pad of x (rows to the tile multiple, cols to 128 lanes);
    # skipped entirely when already aligned.
    if Bp != B or d_in_p != obs_dim:
        x = jnp.pad(x, ((0, Bp - B), (0, d_in_p - obs_dim)))

    def _const_spec(shape):
        # Weights/biases: full-array block, constant index map (DMA'd once,
        # VMEM-resident across the batch grid), single-buffered when supported.
        if weight_mode is None:
            return pl.BlockSpec(shape, lambda i: (0, 0))
        return pl.BlockSpec(shape, lambda i: (0, 0), pipeline_mode=weight_mode)

    flat_args = [x]
    in_specs = [pl.BlockSpec((tb, d_in_p), lambda i: (i, 0))]
    for w, b in padded:
        flat_args += [w, b]
        in_specs += [_const_spec(w.shape), _const_spec(b.shape)]

    flops = 2 * Bp * sum(w.shape[0] * w.shape[1] for w, _ in padded)
    bytes_accessed = Bp * d_in_p * 4 + Bp * d_out_p * 4 + weight_bytes

    out = pl.pallas_call(
        functools.partial(_mlp_kernel, nlayers=nlayers, act_dtype=act_dtype),
        out_shape=jax.ShapeDtypeStruct((Bp, d_out_p), jnp.float32),
        grid=(n_tiles,),
        in_specs=in_specs,
        out_specs=pl.BlockSpec((tb, d_out_p), lambda i: (i, 0)),
        compiler_params=pltpu.CompilerParams(
            dimension_semantics=("parallel",),
            vmem_limit_bytes=vmem_limit),
        cost_estimate=pl.CostEstimate(flops=flops, transcendentals=0,
                                      bytes_accessed=bytes_accessed),
    )(*flat_args)

    out = out[:B, :acs_dim]
    return out[0] if squeeze else out


# ----------------------------------------------------------------------------
# Parameter construction (torch.nn.Linear default init, weights pre-transposed)
# ----------------------------------------------------------------------------
def init_params(key, obs_dim, acs_dim, nlayers, nunits, weight_dtype=jnp.float32):
    sizes = [obs_dim] + [nunits] * nlayers + [acs_dim]
    keys = jax.random.split(key, len(sizes) - 1)
    params = []
    for k, fan_in, fan_out in zip(keys, sizes[:-1], sizes[1:]):
        kw, kb = jax.random.split(k)
        bound = 1.0 / fan_in ** 0.5
        w = jax.random.uniform(kw, (fan_in, fan_out), jnp.float32, -bound, bound)
        b = jax.random.uniform(kb, (fan_out,), jnp.float32, -bound, bound)
        params.append((w.astype(weight_dtype), b.astype(weight_dtype)))
    return params


# ----------------------------------------------------------------------------
# Pure-JAX reference
# ----------------------------------------------------------------------------
def _reference(params, x):
    h = jnp.atleast_2d(x).astype(jnp.float32)
    for i, (w, b) in enumerate(params):
        h = h @ w.astype(jnp.float32) + b.astype(jnp.float32).reshape(1, -1)
        if i < len(params) - 1:
            h = jax.nn.relu(h)
    return h


if __name__ == "__main__":
    key = jax.random.PRNGKey(0)
    k_param, k_x, k_x2 = jax.random.split(key, 3)

    obs_dim, acs_dim, nlayers, nunits, batch = 16, 6, 2, 32, 8
    params = init_params(k_param, obs_dim, acs_dim, nlayers, nunits)
    x = jax.random.normal(k_x, (batch, obs_dim), jnp.float32)

    fwd = jax.jit(disc_q_mlp)
    q = jax.block_until_ready(fwd(params, x))
    q_ref = _reference(params, x)
    assert q.shape == (batch, acs_dim)
    err = float(jnp.max(jnp.abs(q - q_ref)))
    assert jnp.isfinite(q).all() and err < 5e-2, f"f32 mismatch, max abs err={err}"

    # Exercise the batch-tiled "parallel" grid path (B > tile, tail padding,
    # lane-padded output slicing).
    x_big = jax.random.normal(k_x2, (20, obs_dim), jnp.float32)
    q_big = jax.block_until_ready(
        jax.jit(functools.partial(disc_q_mlp, block_b=8))(params, x_big))
    err_big = float(jnp.max(jnp.abs(q_big - _reference(params, x_big))))
    assert q_big.shape == (20, acs_dim) and err_big < 5e-2, (
        f"tiled-grid mismatch, max abs err={err_big}")

    # bf16-stored weights + bf16 inter-layer activations; f32 MXU accumulation.
    params_bf16 = [(w.astype(jnp.bfloat16), b.astype(jnp.bfloat16))
                   for w, b in params]
    q_bf16 = jax.block_until_ready(fwd(params_bf16, x))
    err_bf16 = float(jnp.max(jnp.abs(q_bf16 - q_ref)))
    assert jnp.isfinite(q_bf16).all() and err_bf16 < 1.5e-1, (
        f"bf16 mismatch, max abs err={err_bf16}")

    print("KERNEL_OK")
</pallas_src>

<mosaic_0001>
module attributes {stable_mosaic.version = 11 : i64} {
  func.func @_mlp_kernel(%arg0: i32, %arg1: memref<8x128xf32, #tpu.memory_space<vmem>>, %arg2: memref<128x128xf32, #tpu.memory_space<vmem>>, %arg3: memref<1x128xf32, #tpu.memory_space<vmem>>, %arg4: memref<128x128xf32, #tpu.memory_space<vmem>>, %arg5: memref<1x128xf32, #tpu.memory_space<vmem>>, %arg6: memref<128x128xf32, #tpu.memory_space<vmem>>, %arg7: memref<1x128xf32, #tpu.memory_space<vmem>>, %arg8: memref<8x128xf32, #tpu.memory_space<vmem>>) attributes {dimension_semantics = [#tpu.dimension_semantics<parallel>], iteration_bounds = array<i64: 1>, scalar_prefetch = 0 : i64, scratch_operands = 0 : i64, tpu.core_type = #tpu.core_type<tc>, window_params = [{transform_indices = @transform_0, window_bounds = array<i64: 8, 128>}, {pipeline_mode = #tpu.pipeline_mode<synchronous>, transform_indices = @transform_1, window_bounds = array<i64: 128, 128>}, {pipeline_mode = #tpu.pipeline_mode<synchronous>, transform_indices = @transform_2, window_bounds = array<i64: 1, 128>}, {pipeline_mode = #tpu.pipeline_mode<synchronous>, transform_indices = @transform_3, window_bounds = array<i64: 128, 128>}, {pipeline_mode = #tpu.pipeline_mode<synchronous>, transform_indices = @transform_4, window_bounds = array<i64: 1, 128>}, {pipeline_mode = #tpu.pipeline_mode<synchronous>, transform_indices = @transform_5, window_bounds = array<i64: 128, 128>}, {pipeline_mode = #tpu.pipeline_mode<synchronous>, transform_indices = @transform_6, window_bounds = array<i64: 1, 128>}, {transform_indices = @transform_7, window_bounds = array<i64: 8, 128>}]} {
    %c0 = arith.constant 0 : index
    %c0_0 = arith.constant 0 : index
    %0 = vector.load %arg1[%c0, %c0_0] : memref<8x128xf32, #tpu.memory_space<vmem>>, vector<8x128xf32>
    %c0_1 = arith.constant 0 : index
    %c0_2 = arith.constant 0 : index
    %1 = vector.load %arg2[%c0_1, %c0_2] : memref<128x128xf32, #tpu.memory_space<vmem>>, vector<128x128xf32>
    %c0_3 = arith.constant 0 : index
    %c0_4 = arith.constant 0 : index
    %2 = vector.load %arg3[%c0_3, %c0_4] : memref<1x128xf32, #tpu.memory_space<vmem>>, vector<1x128xf32>
    %cst = arith.constant dense<0.000000e+00> : vector<8x128xf32>
    %3 = tpu.matmul %0, %1, %cst {dimension_numbers = #tpu.dot_dimension_numbers<[1], [0], [0], [1], [0, 0, 1, 1], [], []>} : vector<8x128xf32>, vector<128x128xf32>, vector<8x128xf32> -> vector<8x128xf32>
    %4 = vector.broadcast %2 : vector<1x128xf32> to vector<8x128xf32>
    %5 = arith.addf %3, %4 : vector<8x128xf32>
    %cst_5 = arith.constant 0.000000e+00 : f32
    %6 = vector.broadcast %cst_5 : f32 to vector<8x128xf32>
    %7 = arith.maximumf %5, %6 : vector<8x128xf32>
    %c0_6 = arith.constant 0 : index
    %c0_7 = arith.constant 0 : index
    %8 = vector.load %arg4[%c0_6, %c0_7] : memref<128x128xf32, #tpu.memory_space<vmem>>, vector<128x128xf32>
    %c0_8 = arith.constant 0 : index
    %c0_9 = arith.constant 0 : index
    %9 = vector.load %arg5[%c0_8, %c0_9] : memref<1x128xf32, #tpu.memory_space<vmem>>, vector<1x128xf32>
    %cst_10 = arith.constant dense<0.000000e+00> : vector<8x128xf32>
    %10 = tpu.matmul %7, %8, %cst_10 {dimension_numbers = #tpu.dot_dimension_numbers<[1], [0], [0], [1], [0, 0, 1, 1], [], []>} : vector<8x128xf32>, vector<128x128xf32>, vector<8x128xf32> -> vector<8x128xf32>
    %11 = vector.broadcast %9 : vector<1x128xf32> to vector<8x128xf32>
    %12 = arith.addf %10, %11 : vector<8x128xf32>
    %cst_11 = arith.constant 0.000000e+00 : f32
    %13 = vector.broadcast %cst_11 : f32 to vector<8x128xf32>
    %14 = arith.maximumf %12, %13 : vector<8x128xf32>
    %c0_12 = arith.constant 0 : index
    %c0_13 = arith.constant 0 : index
    %15 = vector.load %arg6[%c0_12, %c0_13] : memref<128x128xf32, #tpu.memory_space<vmem>>, vector<128x128xf32>
    %c0_14 = arith.constant 0 : index
    %c0_15 = arith.constant 0 : index
    %16 = vector.load %arg7[%c0_14, %c0_15] : memref<1x128xf32, #tpu.memory_space<vmem>>, vector<1x128xf32>
    %cst_16 = arith.constant dense<0.000000e+00> : vector<8x128xf32>
    %17 = tpu.matmul %14, %15, %cst_16 {dimension_numbers = #tpu.dot_dimension_numbers<[1], [0], [0], [1], [0, 0, 1, 1], [], []>} : vector<8x128xf32>, vector<128x128xf32>, vector<8x128xf32> -> vector<8x128xf32>
    %18 = vector.broadcast %16 : vector<1x128xf32> to vector<8x128xf32>
    %19 = arith.addf %17, %18 : vector<8x128xf32>
    %c0_17 = arith.constant 0 : index
    %c0_18 = arith.constant 0 : index
    %20 = vector.load %arg8[%c0_17, %c0_18] : memref<8x128xf32, #tpu.memory_space<vmem>>, vector<8x128xf32>
    tpu.vector_store %arg8[%c0_17, %c0_18], %19 {strides = array<i32>} : memref<8x128xf32, #tpu.memory_space<vmem>>, vector<8x128xf32>,
    return
  }
  func.func @transform_0(%arg0: i32) -> (i32, i32) {
    %c0_i32 = arith.constant 0 : i32
    %c0_i32_0 = arith.constant 0 : i32
    return %arg0, %c0_i32 : i32, i32
  }
  func.func @transform_1(%arg0: i32) -> (i32, i32) {
    %c0_i32 = arith.constant 0 : i32
    %c0_i32_0 = arith.constant 0 : i32
    %c0_i32_1 = arith.constant 0 : i32
    return %c0_i32, %c0_i32_0 : i32, i32
  }
  func.func @transform_2(%arg0: i32) -> (i32, i32) {
    %c0_i32 = arith.constant 0 : i32
    %c0_i32_0 = arith.constant 0 : i32
    %c0_i32_1 = arith.constant 0 : i32
    return %c0_i32, %c0_i32_0 : i32, i32
  }
  func.func @transform_3(%arg0: i32) -> (i32, i32) {
    %c0_i32 = arith.constant 0 : i32
    %c0_i32_0 = arith.constant 0 : i32
    %c0_i32_1 = arith.constant 0 : i32
    return %c0_i32, %c0_i32_0 : i32, i32
  }
  func.func @transform_4(%arg0: i32) -> (i32, i32) {
    %c0_i32 = arith.constant 0 : i32
    %c0_i32_0 = arith.constant 0 : i32
    %c0_i32_1 = arith.constant 0 : i32
    return %c0_i32, %c0_i32_0 : i32, i32
  }
  func.func @transform_5(%arg0: i32) -> (i32, i32) {
    %c0_i32 = arith.constant 0 : i32
    %c0_i32_0 = arith.constant 0 : i32
    %c0_i32_1 = arith.constant 0 : i32
    return %c0_i32, %c0_i32_0 : i32, i32
  }
  func.func @transform_6(%arg0: i32) -> (i32, i32) {
    %c0_i32 = arith.constant 0 : i32
    %c0_i32_0 = arith.constant 0 : i32
    %c0_i32_1 = arith.constant 0 : i32
    return %c0_i32, %c0_i32_0 : i32, i32
  }
  func.func @transform_7(%arg0: i32) -> (i32, i32) {
    %c0_i32 = arith.constant 0 : i32
    %c0_i32_0 = arith.constant 0 : i32
    return %arg0, %c0_i32 : i32, i32
  }
}

</mosaic_0001>

<llo_original>
// kernel: disc_q_mlp.1
$region0: #{disc_q_mlp.1}
  #allocation0 [shape = 'u32[]', space=smem, size = 0x4, offset = 0x4, fixed_abs, tag = 'smem constant byte address 0x4 - core index']
  #allocation1 [shape = 'u32[72,128]{1,0:T(1,128)}', space=vmem, size = 0x9000, scoped, tag = 'internal scratch']
  %s0 = inlined_call_operand.vmem [shape: f32[8,128], index: 0, kind: input, shape index: {}]
  %s1 = inlined_call_operand.vmem [shape: f32[128,128], index: 1, kind: input, shape index: {}]
  %s2 = inlined_call_operand.vmem [shape: f32[1,128], index: 2, kind: input, shape index: {}]
  %s3 = inlined_call_operand.vmem [shape: f32[128,128], index: 3, kind: input, shape index: {}]
  %s4 = inlined_call_operand.vmem [shape: f32[1,128], index: 4, kind: input, shape index: {}]
  %s5 = inlined_call_operand.vmem [shape: f32[128,128], index: 5, kind: input, shape index: {}]
  %s6 = inlined_call_operand.vmem [shape: f32[1,128], index: 6, kind: input, shape index: {}]
  %s7 = inlined_call_operand.hbm [shape: f32[8,128], index: 7, kind: output, shape index: {}]
  %s8 = sld [smem:[#allocation0]]
  $region38: #{disc_q_mlp.1} parent=0
    _
  %s10 = ssub.s32 1, %s8
  %s11 = scalar_select 0, %s10, %s8
  $region1: #{disc_q_mlp.1} parent=0
    #allocation2 [shape = 'u8[4096]{0}', space=vmem, size = 0x1000, scoped, tag = 'output window, operand 0, single buffered']
    #allocation3 [shape = 's32[1]{0}', space=sflag, size = 0x4, scoped, tag = 'scoped memory for disc_q_mlp.1']
    %12 = vsyncpa [#allocation3], 0
    // Predicated region
    $region2: #{disc_q_mlp.1} parent=1 // pred_check
      _
    $region3: #{disc_q_mlp.1} parent=1 // pred_check_branch
      %14 = sbr.rel (0) target = $region5
    $region4: #{disc_q_mlp.1} parent=1 // pred_region
      _
    $region5: #{disc_q_mlp.1} parent=1 // pred_fallthru
      _
    // Predicated region
    $region6: #{disc_q_mlp.1} parent=1 // pred_check
      _
    $region7: #{disc_q_mlp.1} parent=1 // pred_check_branch
      %16 = sbr.rel (0) target = $region9
    $region8: #{disc_q_mlp.1} parent=1 // pred_region
      _
    $region9: #{disc_q_mlp.1} parent=1 // pred_fallthru
      _
    // Predicated region
    $region10: #{disc_q_mlp.1} parent=1 // pred_check
      _
    $region11: #{disc_q_mlp.1} parent=1 // pred_check_branch
      %18 = sbr.rel (0) target = $region13
    $region12: #{disc_q_mlp.1} parent=1 // pred_region
      _
    $region13: #{disc_q_mlp.1} parent=1 // pred_fallthru
      _
    // Predicated region
    $region14: #{disc_q_mlp.1} parent=1 // pred_check
      _
    $region15: #{disc_q_mlp.1} parent=1 // pred_check_branch
      %20 = sbr.rel (0) target = $region17
    $region16: #{disc_q_mlp.1} parent=1 // pred_region
      _
    $region17: #{disc_q_mlp.1} parent=1 // pred_fallthru
      _
    // Predicated region
    $region18: #{disc_q_mlp.1} parent=1 // pred_check
      _
    $region19: #{disc_q_mlp.1} parent=1 // pred_check_branch
      %22 = sbr.rel (0) target = $region21
    $region20: #{disc_q_mlp.1} parent=1 // pred_region
      _
    $region21: #{disc_q_mlp.1} parent=1 // pred_fallthru
      _
    // Predicated region
    $region22: #{disc_q_mlp.1} parent=1 // pred_check
      _
    $region23: #{disc_q_mlp.1} parent=1 // pred_check_branch
      %24 = sbr.rel (0) target = $region25
    $region24: #{disc_q_mlp.1} parent=1 // pred_region
      _
    $region25: #{disc_q_mlp.1} parent=1 // pred_fallthru
      _
    // Predicated region
    $region26: #{disc_q_mlp.1} parent=1 // pred_check
      _
    $region27: #{disc_q_mlp.1} parent=1 // pred_check_branch
      %26 = sbr.rel (0) target = $region29
    $region28: #{disc_q_mlp.1} parent=1 // pred_region
      _
    $region29: #{disc_q_mlp.1} parent=1 // pred_fallthru
      _
    %v27 = vld [vmem:[%s0] sm:$0xff]
    %v28 = vld [vmem:[%s1] sm:$0xff]
    %v29 = vld [vmem:[%s1 + $0x8] sm:$0xff]
    %v30 = vld [vmem:[%s1 + $0x10] sm:$0xff]
    %v31 = vld [vmem:[%s1 + $0x18] sm:$0xff]
    %v32 = vld [vmem:[%s1 + $0x20] sm:$0xff]
    %v33 = vld [vmem:[%s1 + $0x28] sm:$0xff]
    %v34 = vld [vmem:[%s1 + $0x30] sm:$0xff]
    %v35 = vld [vmem:[%s1 + $0x38] sm:$0xff]
    %v36 = vld [vmem:[%s1 + $0x40] sm:$0xff]
    %v37 = vld [vmem:[%s1 + $0x48] sm:$0xff]
    %v38 = vld [vmem:[%s1 + $0x50] sm:$0xff]
    %v39 = vld [vmem:[%s1 + $0x58] sm:$0xff]
    %v40 = vld [vmem:[%s1 + $0x60] sm:$0xff]
    %v41 = vld [vmem:[%s1 + $0x68] sm:$0xff]
    %v42 = vld [vmem:[%s1 + $0x70] sm:$0xff]
    %v43 = vld [vmem:[%s1 + $0x78] sm:$0xff]
    %v44 = vld [vmem:[%s2] sm:$0x1]
    %v46 = vperm.slane %v44, 0
    %48 = vmatpush.msra.mxu0 %v43
    %49 = vmatpush.msra.mxu0 %v42
    %50 = vmatpush.msra.mxu0 %v41
    %51 = vmatpush.msra.mxu0 %v40
    %52 = vmatpush.msra.mxu0 %v39
    %53 = vmatpush.msra.mxu0 %v38
    %54 = vmatpush.msra.mxu0 %v37
    %55 = vmatpush.msra.mxu0 %v36
    %56 = vmatpush.msra.mxu0 %v35
    %57 = vmatpush.msra.mxu0 %v34
    %58 = vmatpush.msra.mxu0 %v33
    %59 = vmatpush.msra.mxu0 %v32
    %60 = vmatpush.msra.mxu0 %v31
    %61 = vmatpush.msra.mxu0 %v30
    %62 = vmatpush.msra.mxu0 %v29
    %63 = vmatpush.msra.mxu0 %v28
    %64 = vmatmul.f32.gmra.mxu0 %v27
    %v65 = vpop.f32.mrf.mxu0
    %v66 = vadd.f32 %v46, %v65
    %67 = vdwg.mxu0
    %v68 = vmax.f32 %v66, 0.0
    %v69 = vld [vmem:[%s3] sm:$0xff]
    %v70 = vld [vmem:[%s3 + $0x8] sm:$0xff]
    %v71 = vld [vmem:[%s3 + $0x10] sm:$0xff]
    %v72 = vld [vmem:[%s3 + $0x18] sm:$0xff]
    %v73 = vld [vmem:[%s3 + $0x20] sm:$0xff]
    %v74 = vld [vmem:[%s3 + $0x28] sm:$0xff]
    %v75 = vld [vmem:[%s3 + $0x30] sm:$0xff]
    %v76 = vld [vmem:[%s3 + $0x38] sm:$0xff]
    %v77 = vld [vmem:[%s3 + $0x40] sm:$0xff]
    %v78 = vld [vmem:[%s3 + $0x48] sm:$0xff]
    %v79 = vld [vmem:[%s3 + $0x50] sm:$0xff]
    %v80 = vld [vmem:[%s3 + $0x58] sm:$0xff]
    %v81 = vld [vmem:[%s3 + $0x60] sm:$0xff]
    %v82 = vld [vmem:[%s3 + $0x68] sm:$0xff]
    %v83 = vld [vmem:[%s3 + $0x70] sm:$0xff]
    %v84 = vld [vmem:[%s3 + $0x78] sm:$0xff]
    %v85 = vld [vmem:[%s4] sm:$0x1]
    %v87 = vperm.slane %v85, 0
    %89 = vmatpush.msra.mxu0 %v84
    %90 = vmatpush.msra.mxu0 %v83
    %91 = vmatpush.msra.mxu0 %v82
    %92 = vmatpush.msra.mxu0 %v81
    %93 = vmatpush.msra.mxu0 %v80
    %94 = vmatpush.msra.mxu0 %v79
    %95 = vmatpush.msra.mxu0 %v78
    %96 = vmatpush.msra.mxu0 %v77
    %97 = vmatpush.msra.mxu0 %v76
    %98 = vmatpush.msra.mxu0 %v75
    %99 = vmatpush.msra.mxu0 %v74
    %100 = vmatpush.msra.mxu0 %v73
    %101 = vmatpush.msra.mxu0 %v72
    %102 = vmatpush.msra.mxu0 %v71
    %103 = vmatpush.msra.mxu0 %v70
    %104 = vmatpush.msra.mxu0 %v69
    %105 = vmatmul.f32.gmra.mxu0 %v68
    %v106 = vpop.f32.mrf.mxu0
    %v107 = vadd.f32 %v87, %v106
    %108 = vdwg.mxu0
    %v109 = vmax.f32 %v107, 0.0
    %v110 = vld [vmem:[%s5] sm:$0xff]
    %v111 = vld [vmem:[%s5 + $0x8] sm:$0xff]
    %v112 = vld [vmem:[%s5 + $0x10] sm:$0xff]
    %v113 = vld [vmem:[%s5 + $0x18] sm:$0xff]
    %v114 = vld [vmem:[%s5 + $0x20] sm:$0xff]
    %v115 = vld [vmem:[%s5 + $0x28] sm:$0xff]
    %v116 = vld [vmem:[%s5 + $0x30] sm:$0xff]
    %v117 = vld [vmem:[%s5 + $0x38] sm:$0xff]
    %v118 = vld [vmem:[%s5 + $0x40] sm:$0xff]
    %v119 = vld [vmem:[%s5 + $0x48] sm:$0xff]
    %v120 = vld [vmem:[%s5 + $0x50] sm:$0xff]
    %v121 = vld [vmem:[%s5 + $0x58] sm:$0xff]
    %v122 = vld [vmem:[%s5 + $0x60] sm:$0xff]
    %v123 = vld [vmem:[%s5 + $0x68] sm:$0xff]
    %v124 = vld [vmem:[%s5 + $0x70] sm:$0xff]
    %v125 = vld [vmem:[%s5 + $0x78] sm:$0xff]
    %v126 = vld [vmem:[%s6] sm:$0x1]
    %v128 = vperm.slane %v126, 0
    %130 = vmatpush.msra.mxu0 %v125
    %131 = vmatpush.msra.mxu0 %v124
    %132 = vmatpush.msra.mxu0 %v123
    %133 = vmatpush.msra.mxu0 %v122
    %134 = vmatpush.msra.mxu0 %v121
    %135 = vmatpush.msra.mxu0 %v120
    %136 = vmatpush.msra.mxu0 %v119
    %137 = vmatpush.msra.mxu0 %v118
    %138 = vmatpush.msra.mxu0 %v117
    %139 = vmatpush.msra.mxu0 %v116
    %140 = vmatpush.msra.mxu0 %v115
    %141 = vmatpush.msra.mxu0 %v114
    %142 = vmatpush.msra.mxu0 %v113
    %143 = vmatpush.msra.mxu0 %v112
    %144 = vmatpush.msra.mxu0 %v111
    %145 = vmatpush.msra.mxu0 %v110
    %146 = vmatmul.f32.gmra.mxu0 %v109
    %v147 = vpop.f32.mrf.mxu0
    %v148 = vadd.f32 %v128, %v147
    %149 = vdwg.mxu0
    %150 = vst [vmem:[#allocation2] sm:$0xff] %v148
    // Predicated region
    $region30: #{disc_q_mlp.1} parent=1 // pred_check
      _
    $region31: #{disc_q_mlp.1} parent=1 // pred_check_branch
      %152 = sbr.rel (0) target = $region33
    $region32: #{disc_q_mlp.1} parent=1 // pred_region
      %154 = vsyncadd [#allocation3], 0
      %s156 = sshll.u32 [#allocation2], 4
      %s157 = int_to_ptr.vmem [resolvable:$true] %s156
      %s158 = sshll.u32 %s7, 4
      %s159 = int_to_ptr.hbm [resolvable:$true] %s158
      %161 = dma.vmem_to_hbm [thread:$0]  %s157, 128, %s159, [#allocation3]
    $region33: #{disc_q_mlp.1} parent=1 // pred_fallthru
      _
    // Predicated region
    $region34: #{disc_q_mlp.1} parent=1 // pred_check
      _
    $region35: #{disc_q_mlp.1} parent=1 // pred_check_branch
      %163 = sbr.rel (0) target = $region37
    $region36: #{disc_q_mlp.1} parent=1 // pred_region
      %165 = dma.done [#allocation3], 128
    $region37: #{disc_q_mlp.1} parent=1 // pred_fallthru
      _
    %166 = vsyncpa [#allocation3], 1

</llo_original>
